<compile_context>
chip_gen: v7x
topology: tpu7x:2x2x1
jax: 0.10.0
libtpu: 0.0.40
codegen_flags: <defaults>
</compile_context>

<pallas_src>
import functools

import jax
import jax.numpy as jnp
from jax.experimental import pallas as pl
from jax.experimental.pallas import tpu as pltpu

EPS = 1e-5
_LANE = 128
_SUB = 8
# ~0.35 us/grid-step overhead dominates for small blocks; >=1 MiB blocks reach
# ~85% of HBM roofline, so target a few MiB per input block.
_TARGET_BLOCK_BYTES = 4 << 20   # fused (Path A) per-input-block target
_CHUNK_BLOCK_BYTES = 2 << 20    # chunked (Path B) per-input-block target


def _round_up(v, m):
    return ((v + m - 1) // m) * m


def _cdiv(a, b):
    return -(-a // b)


def _vmem_budget():
    try:
        vmem_cap = int(pltpu.get_tpu_info().vmem_capacity_bytes)
    except Exception:  # conservative fallback (v7x-sized VMEM)
        vmem_cap = 64 << 20
    budget = vmem_cap // 2                                   # headroom for compiler scratch
    vmem_limit = min(vmem_cap - vmem_cap // 4, 100 << 20)    # ~3/4 of physical
    return budget, vmem_limit


# ----------------------------------------------------------------------------
# Path A: whole batch resident per channel tile (single fused pass).
# ----------------------------------------------------------------------------
def _bn_fused_kernel(x_ref, w_ref, b_ref, o_ref, *, eps: float):
    x = x_ref[...].astype(jnp.float32)                       # (N, Tc)
    inv_n = 1.0 / x.shape[0]
    mean = jnp.sum(x, axis=0, keepdims=True) * inv_n          # (1, Tc)
    d = x - mean
    # Two-pass variance: x is VMEM-resident, so this costs no extra HBM traffic
    # and avoids the E[x^2] - mean^2 cancellation.
    var = jnp.sum(d * d, axis=0, keepdims=True) * inv_n
    scale = jax.lax.rsqrt(var + eps) * w_ref[...].astype(jnp.float32)
    o_ref[...] = (d * scale + b_ref[...].astype(jnp.float32)).astype(o_ref.dtype)


# ----------------------------------------------------------------------------
# Path B: N chunked.  Pass 1 = per-channel sum / sum-of-squares accumulation.
# ----------------------------------------------------------------------------
def _bn_stats_kernel(x_ref, s1_ref, s2_ref, *, n_rows: int, tile_n: int):
    jn = pl.program_id(1)

    @pl.when(jn == 0)
    def _():
        s1_ref[...] = jnp.zeros_like(s1_ref)
        s2_ref[...] = jnp.zeros_like(s2_ref)

    x = x_ref[...].astype(jnp.float32)                        # (Tn, Tc)
    rows = jax.lax.broadcasted_iota(jnp.int32, x.shape, 0) + jn * tile_n
    x = jnp.where(rows < n_rows, x, 0.0)                      # mask ragged last N tile
    s1_ref[...] += jnp.sum(x, axis=0, keepdims=True)
    s2_ref[...] += jnp.sum(x * x, axis=0, keepdims=True)


# Pass 2 of Path B: elementwise y = x * scale + shift.
def _bn_scale_kernel(x_ref, sc_ref, sh_ref, o_ref):
    o_ref[...] = (x_ref[...].astype(jnp.float32) * sc_ref[...]
                  + sh_ref[...]).astype(o_ref.dtype)


def bn_forward(x, weight, bias, *, eps=EPS, tile_c=None, tile_n=None,
               force_chunked=False):
    """Training-mode BatchNorm1d forward.  x: (N, C); weight, bias: (C,)."""
    n, c = x.shape
    itemsize = x.dtype.itemsize
    budget, vmem_limit = _vmem_budget()
    aligned = (c % _LANE == 0)

    w2 = weight.reshape(1, c)
    b2 = bias.reshape(1, c)

    # Per channel column of an (N, tile_c) block: 2x double-buffered input +
    # 2x double-buffered output (native dtype) + ~2 resident f32 temporaries.
    per_chan = n * (4 * itemsize + 2 * 4)
    min_tc = _LANE if aligned else c

    # ---------------- Path A: fused, whole batch resident --------------------
    if (not force_chunked) and per_chan * min_tc <= budget:
        cap_tc = max(_LANE, (budget // per_chan) // _LANE * _LANE)
        if aligned:
            if tile_c is not None:
                tc = min(max(_LANE, _round_up(int(tile_c), _LANE)), c, cap_tc)
            else:
                # Size the channel tile by bytes (~_TARGET per input block).
                tgt_tc = max(_LANE,
                             (_TARGET_BLOCK_BYTES // max(n * itemsize, 1))
                             // _LANE * _LANE)
                tc = min(cap_tc, tgt_tc, c)
                steps = _cdiv(c, tc)
                if 1 < steps < 4:
                    # Keep >= 4 grid steps so double-buffering actually overlaps.
                    tc = min(tc, max(_LANE, _round_up(_cdiv(c, 4), _LANE)))
        else:
            # Sub-128 / unaligned C: single full-width block (masked stores),
            # no padding of x and no output slice.
            tc = c
        grid_c = _cdiv(c, tc)

        return pl.pallas_call(
            functools.partial(_bn_fused_kernel, eps=eps),
            out_shape=jax.ShapeDtypeStruct((n, c), x.dtype),
            grid=(grid_c,),
            in_specs=[
                pl.BlockSpec((n, tc), lambda j: (0, j)),
                pl.BlockSpec((1, tc), lambda j: (0, j)),
                pl.BlockSpec((1, tc), lambda j: (0, j)),
            ],
            out_specs=pl.BlockSpec((n, tc), lambda j: (0, j)),
            compiler_params=pltpu.CompilerParams(
                # Channel tiles are independent.
                # TODO(synk): evaluate pltpu.CORE_PARALLEL here for a real 2-TC
                # split on v7x; plain "parallel" is neutral on v5e/v6e.
                dimension_semantics=("parallel",),
                vmem_limit_bytes=vmem_limit,
            ),
        )(x, w2, b2)

    # ---------------- Path B: N chunked (large batch) -------------------------
    if aligned:
        if tile_c is not None:
            tc = min(max(_LANE, _round_up(int(tile_c), _LANE)), c)
        else:
            tc = min(c, 1024)
    else:
        tc = c
    per_elem = 4 * itemsize + 4                               # in/out x2 + f32 temp
    if tile_n is not None:
        tn = max(_SUB, _round_up(int(tile_n), _SUB))
    else:
        tn = max(_SUB, (_CHUNK_BLOCK_BYTES // max(tc * itemsize, 1)) // _SUB * _SUB)
    tn = min(tn, _round_up(n, _SUB))
    while tn > _SUB and tn * tc * per_elem > budget:
        tn = max(_SUB, (tn // 2) // _SUB * _SUB)

    grid_c = _cdiv(c, tc)
    grid_n = _cdiv(n, tn)
    cparams = pltpu.CompilerParams(
        dimension_semantics=("parallel", "arbitrary"),
        vmem_limit_bytes=vmem_limit,
    )

    # Pass 1: per-channel sum and sum-of-squares (f32 accumulators resident
    # across the N axis; init via pl.when at jn == 0).
    s1, s2 = pl.pallas_call(
        functools.partial(_bn_stats_kernel, n_rows=n, tile_n=tn),
        out_shape=(jax.ShapeDtypeStruct((1, c), jnp.float32),
                   jax.ShapeDtypeStruct((1, c), jnp.float32)),
        grid=(grid_c, grid_n),
        in_specs=[pl.BlockSpec((tn, tc), lambda jc, jn: (jn, jc))],
        out_specs=(pl.BlockSpec((1, tc), lambda jc, jn: (0, jc)),
                   pl.BlockSpec((1, tc), lambda jc, jn: (0, jc))),
        compiler_params=cparams,
    )(x)

    # Tiny (C-sized) fold in plain JAX: scale/shift from the statistics.
    # TODO(synk): one-pass E[x^2]-mean^2 here can lose precision when
    # |mean| >> std; a chunk-merged (Welford) accumulator would fix it.
    inv_n = 1.0 / n
    mean = s1 * inv_n
    var = jnp.maximum(s2 * inv_n - mean * mean, 0.0)
    scale = w2.astype(jnp.float32) * jax.lax.rsqrt(var + eps)
    shift = b2.astype(jnp.float32) - mean * scale

    # Pass 2: elementwise normalize.
    return pl.pallas_call(
        _bn_scale_kernel,
        out_shape=jax.ShapeDtypeStruct((n, c), x.dtype),
        grid=(grid_c, grid_n),
        in_specs=[
            pl.BlockSpec((tn, tc), lambda jc, jn: (jn, jc)),
            pl.BlockSpec((1, tc), lambda jc, jn: (0, jc)),
            pl.BlockSpec((1, tc), lambda jc, jn: (0, jc)),
        ],
        out_specs=pl.BlockSpec((tn, tc), lambda jc, jn: (jn, jc)),
        compiler_params=pltpu.CompilerParams(
            dimension_semantics=("parallel", "parallel"),
            vmem_limit_bytes=vmem_limit,
        ),
    )(x, scale, shift)


if __name__ == "__main__":
    key = jax.random.PRNGKey(0)
    ks = jax.random.split(key, 8)

    def ref_bn(x, w, b, eps=EPS):
        xf = x.astype(jnp.float32)
        mean = jnp.mean(xf, axis=0, keepdims=True)
        var = jnp.mean((xf - mean) ** 2, axis=0, keepdims=True)
        return (xf - mean) * jax.lax.rsqrt(var + eps) * w + b

    # Case 1: module-style small shape (Bn bottleneck); weight=1, bias=0 per
    # weights_init_kaiming.  C=32 < 128 -> single full-width block, no padding.
    N, C = 8, 32
    x = jax.random.normal(ks[0], (N, C), dtype=jnp.float32)
    w = jnp.ones((C,), jnp.float32)
    b = jnp.zeros((C,), jnp.float32)
    y = bn_forward(x, w, b)
    jax.block_until_ready(y)
    assert y.shape == (N, C) and y.dtype == x.dtype
    assert jnp.allclose(y, ref_bn(x, w, b), atol=1e-4, rtol=1e-4), "case 1 mismatch"

    # Case 2: multi-tile channel grid on the fused path (3 tiles of 128),
    # with non-trivial mean/std and a general affine.
    N2, C2 = 16, 384
    x2 = jax.random.normal(ks[1], (N2, C2), dtype=jnp.float32) * 3.0 + 5.0
    w2 = jax.random.normal(ks[2], (C2,), dtype=jnp.float32)
    b2 = jax.random.normal(ks[3], (C2,), dtype=jnp.float32)
    y2 = bn_forward(x2, w2, b2, tile_c=128)
    jax.block_until_ready(y2)
    assert jnp.allclose(y2, ref_bn(x2, w2, b2), atol=1e-4, rtol=1e-4), "case 2 mismatch"

    # Case 3: chunked large-N path (stats accumulation + normalize) with a
    # ragged last N tile to exercise the row mask.
    N3, C3 = 28, 256
    x3 = jax.random.normal(ks[4], (N3, C3), dtype=jnp.float32)
    w3 = jax.random.normal(ks[5], (C3,), dtype=jnp.float32)
    b3 = jax.random.normal(ks[6], (C3,), dtype=jnp.float32)
    y3 = bn_forward(x3, w3, b3, force_chunked=True, tile_c=128, tile_n=8)
    jax.block_until_ready(y3)
    assert jnp.allclose(y3, ref_bn(x3, w3, b3), atol=1e-4, rtol=1e-4), "case 3 mismatch"

    # Case 4: bf16 input on the fused path (f32 statistics, bf16 store).
    N4, C4 = 8, 128
    x4 = jax.random.normal(ks[7], (N4, C4), dtype=jnp.float32).astype(jnp.bfloat16)
    w4 = jnp.ones((C4,), jnp.float32)
    b4 = jnp.zeros((C4,), jnp.float32)
    y4 = bn_forward(x4, w4, b4)
    jax.block_until_ready(y4)
    assert y4.dtype == jnp.bfloat16
    assert jnp.allclose(y4.astype(jnp.float32), ref_bn(x4, w4, b4),
                        atol=5e-2, rtol=5e-2), "case 4 mismatch"

    print("KERNEL_OK")
</pallas_src>

<mosaic_0001>
module attributes {stable_mosaic.version = 11 : i64} {
  func.func @_bn_fused_kernel(%arg0: i32, %arg1: memref<8x32xf32, #tpu.memory_space<vmem>>, %arg2: memref<1x32xf32, #tpu.memory_space<vmem>>, %arg3: memref<1x32xf32, #tpu.memory_space<vmem>>, %arg4: memref<8x32xf32, #tpu.memory_space<vmem>>) attributes {dimension_semantics = [#tpu.dimension_semantics<parallel>], iteration_bounds = array<i64: 1>, scalar_prefetch = 0 : i64, scratch_operands = 0 : i64, tpu.core_type = #tpu.core_type<tc>, window_params = [{transform_indices = @transform_0, window_bounds = array<i64: 8, 32>}, {transform_indices = @transform_1, window_bounds = array<i64: 1, 32>}, {transform_indices = @transform_2, window_bounds = array<i64: 1, 32>}, {transform_indices = @transform_3, window_bounds = array<i64: 8, 32>}]} {
    %c0 = arith.constant 0 : index
    %c0_0 = arith.constant 0 : index
    %0 = vector.load %arg1[%c0, %c0_0] : memref<8x32xf32, #tpu.memory_space<vmem>>, vector<8x32xf32>
    %cst = arith.constant dense<0.000000e+00> : vector<32xf32>
    %1 = vector.multi_reduction <add>, %0, %cst [0] : vector<8x32xf32> to vector<32xf32>
    %2 = vector.shape_cast %1 : vector<32xf32> to vector<1x32xf32>
    %cst_1 = arith.constant 1.250000e-01 : f32
    %3 = vector.broadcast %cst_1 : f32 to vector<1x32xf32>
    %4 = arith.mulf %2, %3 : vector<1x32xf32>
    %5 = vector.broadcast %4 : vector<1x32xf32> to vector<8x32xf32>
    %6 = arith.subf %0, %5 : vector<8x32xf32>
    %7 = arith.mulf %6, %6 : vector<8x32xf32>
    %cst_2 = arith.constant dense<0.000000e+00> : vector<32xf32>
    %8 = vector.multi_reduction <add>, %7, %cst_2 [0] : vector<8x32xf32> to vector<32xf32>
    %9 = vector.shape_cast %8 : vector<32xf32> to vector<1x32xf32>
    %cst_3 = arith.constant 1.250000e-01 : f32
    %10 = vector.broadcast %cst_3 : f32 to vector<1x32xf32>
    %11 = arith.mulf %9, %10 : vector<1x32xf32>
    %cst_4 = arith.constant 9.99999974E-6 : f32
    %12 = vector.broadcast %cst_4 : f32 to vector<1x32xf32>
    %13 = arith.addf %11, %12 : vector<1x32xf32>
    %14 = math.rsqrt %13 : vector<1x32xf32>
    %c0_5 = arith.constant 0 : index
    %c0_6 = arith.constant 0 : index
    %15 = vector.load %arg2[%c0_5, %c0_6] : memref<1x32xf32, #tpu.memory_space<vmem>>, vector<1x32xf32>
    %16 = arith.mulf %14, %15 : vector<1x32xf32>
    %17 = vector.broadcast %16 : vector<1x32xf32> to vector<8x32xf32>
    %18 = arith.mulf %6, %17 : vector<8x32xf32>
    %c0_7 = arith.constant 0 : index
    %c0_8 = arith.constant 0 : index
    %19 = vector.load %arg3[%c0_7, %c0_8] : memref<1x32xf32, #tpu.memory_space<vmem>>, vector<1x32xf32>
    %20 = vector.broadcast %19 : vector<1x32xf32> to vector<8x32xf32>
    %21 = arith.addf %18, %20 : vector<8x32xf32>
    %c0_9 = arith.constant 0 : index
    %c0_10 = arith.constant 0 : index
    %22 = vector.load %arg4[%c0_9, %c0_10] : memref<8x32xf32, #tpu.memory_space<vmem>>, vector<8x32xf32>
    tpu.vector_store %arg4[%c0_9, %c0_10], %21 {strides = array<i32>} : memref<8x32xf32, #tpu.memory_space<vmem>>, vector<8x32xf32>,
    return
  }
  func.func @transform_0(%arg0: i32) -> (i32, i32) {
    %c0_i32 = arith.constant 0 : i32
    %c0_i32_0 = arith.constant 0 : i32
    return %c0_i32, %arg0 : i32, i32
  }
  func.func @transform_1(%arg0: i32) -> (i32, i32) {
    %c0_i32 = arith.constant 0 : i32
    %c0_i32_0 = arith.constant 0 : i32
    return %c0_i32, %arg0 : i32, i32
  }
  func.func @transform_2(%arg0: i32) -> (i32, i32) {
    %c0_i32 = arith.constant 0 : i32
    %c0_i32_0 = arith.constant 0 : i32
    return %c0_i32, %arg0 : i32, i32
  }
  func.func @transform_3(%arg0: i32) -> (i32, i32) {
    %c0_i32 = arith.constant 0 : i32
    %c0_i32_0 = arith.constant 0 : i32
    return %c0_i32, %arg0 : i32, i32
  }
}

</mosaic_0001>

<llo_original>
// kernel: tpu_custom_call.1
$region0: #{tpu_custom_call.1}
  #allocation0 [shape = 'u32[]', space=smem, size = 0x4, offset = 0x4, fixed_abs, tag = 'smem constant byte address 0x4 - core index']
  #allocation1 [shape = 'u32[144,128]{1,0:T(1,128)}', space=vmem, size = 0x12000, scoped, tag = 'internal scratch']
  %s0 = inlined_call_operand.hbm [shape: f32[8,32], index: 0, kind: input, shape index: {}]
  %s1 = inlined_call_operand.vmem [shape: f32[1,32], index: 1, kind: input, shape index: {}]
  %s2 = inlined_call_operand.vmem [shape: f32[1,32], index: 2, kind: input, shape index: {}]
  %s3 = inlined_call_operand.hbm [shape: f32[8,32], index: 3, kind: output, shape index: {}]
  %s4 = sld [smem:[#allocation0]]
  $region26: #{tpu_custom_call.1} parent=0
    _
  %s6 = ssub.s32 1, %s4
  %s7 = scalar_select 0, %s6, %s4
  $region1: #{tpu_custom_call.1} parent=0
    #allocation2 [shape = 'u8[4096]{0}', space=vmem, size = 0x1000, scoped, tag = 'input window, operand 0, single buffered']
    #allocation3 [shape = 's32[1]{0}', space=sflag, size = 0x4, scoped, tag = 'scoped memory for tpu_custom_call.1']
    #allocation4 [shape = 's32[1]{0}', space=sflag, size = 0x4, scoped, tag = 'scoped memory for tpu_custom_call.1']
    #allocation5 [shape = 'u8[4096]{0}', space=vmem, size = 0x1000, scoped, tag = 'output window, operand 0, single buffered']
    %8 = vsyncpa [#allocation3], 0
    %9 = vsyncpa [#allocation4], 0
    // Predicated region
    $region2: #{tpu_custom_call.1} parent=1 // pred_check
      _
    $region3: #{tpu_custom_call.1} parent=1 // pred_check_branch
      %11 = sbr.rel (0) target = $region5
    $region4: #{tpu_custom_call.1} parent=1 // pred_region
      %s13 = ssub.s32 128, 128
      %14 = vsyncadd [#allocation3], %s13
      %s16 = sshll.u32 [#allocation2], 4
      %s17 = int_to_ptr.vmem [resolvable:$true] %s16
      %19 = dma.hbm_to_vmem [thread:$0]  %s0, 128, %s17, [#allocation3]
    $region5: #{tpu_custom_call.1} parent=1 // pred_fallthru
      _
    // Predicated region
    $region6: #{tpu_custom_call.1} parent=1 // pred_check
      _
    $region7: #{tpu_custom_call.1} parent=1 // pred_check_branch
      %21 = sbr.rel (0) target = $region9
    $region8: #{tpu_custom_call.1} parent=1 // pred_region
      _
    $region9: #{tpu_custom_call.1} parent=1 // pred_fallthru
      _
    // Predicated region
    $region10: #{tpu_custom_call.1} parent=1 // pred_check
      _
    $region11: #{tpu_custom_call.1} parent=1 // pred_check_branch
      %23 = sbr.rel (0) target = $region13
    $region12: #{tpu_custom_call.1} parent=1 // pred_region
      _
    $region13: #{tpu_custom_call.1} parent=1 // pred_fallthru
      _
    // Predicated region
    $region14: #{tpu_custom_call.1} parent=1 // pred_check
      _
    $region15: #{tpu_custom_call.1} parent=1 // pred_check_branch
      %25 = sbr.rel (0) target = $region17
    $region16: #{tpu_custom_call.1} parent=1 // pred_region
      %26 = dma.done [#allocation3], 128
    $region17: #{tpu_custom_call.1} parent=1 // pred_fallthru
      _
    %v27 = vld [vmem:[#allocation2] sm:$0xff]
    %vm28 = vcmask 261120
    %v29 = vsel %vm28, %v27, 0.0
    %v30 = vrot.slane %v29, 4
    %v31 = vadd.f32 %v29, %v30
    %v32 = vrot.slane %v31, 2
    %v33 = vadd.f32 %v31, %v32
    %v34 = vrot.slane %v33, 1
    %v35 = vadd.f32 %v33, %v34
    %v36 = vmul.f32 %v35, 0.125
    %v37 = vsub.f32 %v27, %v36
    %v38 = vmul.f32 %v37, %v37
    %v39 = vsel %vm28, %v38, 0.0
    %v40 = vrot.slane %v39, 4
    %v41 = vadd.f32 %v39, %v40
    %v42 = vrot.slane %v41, 2
    %v43 = vadd.f32 %v41, %v42
    %v44 = vrot.slane %v43, 1
    %v45 = vadd.f32 %v43, %v44
    %v46 = vmul.f32 %v45, 0.125
    %v47 = vadd.f32 %v46, 1e-05
    %v48 = vrsqrt.pop %v47
    %v49 = vld [vmem:[%s1] sm:$0x1]
    %v50 = vmul.f32 %v48, %v49
    %v51 = vlaneseq
    %v52 = vshrl.u32 %v51, 7
    %v53 = vsub.s32 0, %v52
    %v54 = vrot.slane %v50, %v53
    %v55 = vmul.f32 %v37, %v54
    %v56 = vld [vmem:[%s2] sm:$0x1]
    %v58 = vlaneseq
    %v59 = vshrl.u32 %v58, 7
    %v60 = vsub.s32 0, %v59
    %v61 = vrot.slane %v56, %v60
    %v63 = vadd.f32 %v55, %v61
    %64 = vst.msk [vmem:[#allocation5] sm:$0xff] %vm28, %v63
    // Predicated region
    $region18: #{tpu_custom_call.1} parent=1 // pred_check
      _
    $region19: #{tpu_custom_call.1} parent=1 // pred_check_branch
      %66 = sbr.rel (0) target = $region21
    $region20: #{tpu_custom_call.1} parent=1 // pred_region
      %s68 = ssub.s32 128, 128
      %69 = vsyncadd [#allocation4], %s68
      %s71 = sshll.u32 [#allocation5], 4
      %s72 = int_to_ptr.vmem [resolvable:$true] %s71
      %74 = dma.vmem_to_hbm [thread:$0]  %s72, 128, %s3, [#allocation4]
    $region21: #{tpu_custom_call.1} parent=1 // pred_fallthru
      _
    // Predicated region
    $region22: #{tpu_custom_call.1} parent=1 // pred_check
      _
    $region23: #{tpu_custom_call.1} parent=1 // pred_check_branch
      %76 = sbr.rel (0) target = $region25
    $region24: #{tpu_custom_call.1} parent=1 // pred_region
      %77 = dma.done [#allocation4], 128
    $region25: #{tpu_custom_call.1} parent=1 // pred_fallthru
      _
    %78 = vsyncpa [#allocation3], 1
    %79 = vsyncpa [#allocation4], 1

</llo_original>
